<compile_context>
chip_gen: v7x
topology: tpu7x:2x2x1
jax: 0.10.0
libtpu: 0.0.40
codegen_flags: <defaults>
</compile_context>

<pallas_src>
import jax
import jax.numpy as jnp
from jax.experimental import pallas as pl
from jax.experimental.pallas import tpu as pltpu


# --------------------------------------------------------------------------
# Kernels
# --------------------------------------------------------------------------

def _adff_fused_kernel(x_ref, y_ref, w_ref, b_ref, x6_ref, x7_ref):
    """Single-pass per-batch body.  Channels on sublanes, HW on lanes.

    x_ref/y_ref:   (1, C, HW) input blocks (full spatial extent)
    w_ref:         (C, C)     shared 1x1 conv weight (out_ch x in_ch)
    b_ref:         (C, 1)     bias, f32
    x6_ref/x7_ref: (1, C, HW) outputs
    """
    w = w_ref[...]
    b = b_ref[...]
    xt = x_ref[0]
    yt = y_ref[0]
    if xt.dtype != w.dtype:
        xt = xt.astype(w.dtype)
        yt = yt.astype(w.dtype)

    # 1x1 conv == channel-mixing matmul; spatial stays dense on lanes.
    cx = jnp.dot(w, xt, preferred_element_type=jnp.float32) + b       # (C, HW)
    cy = jnp.dot(w, yt, preferred_element_type=jnp.float32) + b       # (C, HW)
    x1 = cx + cy
    bsig = jax.nn.sigmoid(x1)

    # Pooled branch (tiny): GAP -> conv -> sigmoid -> conv.  Run it 128 lanes
    # wide (all columns identical) so the MXU sees a well-formed tile, then
    # take column 0.
    wf = w.astype(jnp.float32)
    x2 = jnp.broadcast_to(jnp.mean(x1, axis=-1, keepdims=True),
                          (x1.shape[0], 128))                          # (C, 128)
    x3 = jnp.dot(wf, x2, preferred_element_type=jnp.float32) + b
    x4 = jax.nn.sigmoid(x3)
    x5 = (jnp.dot(wf, x4, preferred_element_type=jnp.float32) + b)[:, 0:1]  # (C, 1)

    scaled = bsig * x5
    x6_ref[0] = (scaled + cx).astype(x6_ref.dtype)
    x7_ref[0] = (scaled + cy).astype(x7_ref.dtype)


def _adff_tiled_kernel(x_ref, y_ref, w_ref, b_ref, x5_ref, x6_ref, x7_ref):
    """Per-(batch, spatial-tile) body; pooled-branch result x5 is precomputed.

    x_ref/y_ref:   (1, C, T) input tiles
    w_ref:         (C, C)    shared 1x1 conv weight
    b_ref:         (C, 1)    bias, f32
    x5_ref:        (1, C, 1) precomputed pooled-branch result, f32
    x6_ref/x7_ref: (1, C, T) outputs
    """
    w = w_ref[...]
    b = b_ref[...]
    x5 = x5_ref[0]                                                     # (C, 1)
    xt = x_ref[0]
    yt = y_ref[0]
    if xt.dtype != w.dtype:
        xt = xt.astype(w.dtype)
        yt = yt.astype(w.dtype)

    cx = jnp.dot(w, xt, preferred_element_type=jnp.float32) + b        # (C, T)
    cy = jnp.dot(w, yt, preferred_element_type=jnp.float32) + b        # (C, T)
    scaled = jax.nn.sigmoid(cx + cy) * x5
    x6_ref[0] = (scaled + cx).astype(x6_ref.dtype)
    x7_ref[0] = (scaled + cy).astype(x7_ref.dtype)


# --------------------------------------------------------------------------
# Wrapper
# --------------------------------------------------------------------------

_VMEM_LIMIT_BYTES = 48 * 1024 * 1024      # <= v7x's 64 MiB physical VMEM
_FUSED_VMEM_BUDGET = 20 * 1024 * 1024     # conservative gate across generations


def _fused_vmem_bytes(C, HW, io_bytes):
    io = 4 * 2 * C * HW * io_bytes        # x, y, x6, x7 double-buffered blocks
    interm = 5 * C * HW * 4               # cx, cy, x1, bsig, scaled (f32)
    return io + interm + C * C * 4 + 4 * C


def _choose_tile(C, hw, io_bytes):
    """Lane-tile T: ~2 MiB per (C, T) input block, multiple of 128, capped at
    4096; if the whole spatial extent fits, take it in one block."""
    t = (2 << 20) // max(1, C * io_bytes)
    t = max(128, (t // 128) * 128)
    t = min(t, 4096)
    return hw if hw <= t else t


def adff_forward(x_nchw, y_nchw, weight, bias, *, tile_hint=None,
                 force_two_pass=False):
    """x, y: (B, C, H, W); weight: (C, C) of the shared 1x1 conv; bias: (C,)."""
    Bn, C, H, W = x_nchw.shape
    assert weight.shape == (C, C), "conv1 is reused, so in_ch must equal out_ch"
    HW = H * W
    io_dtype = x_nchw.dtype
    io_bytes = jnp.dtype(io_dtype).itemsize

    # Channels-first flattening: pure reshape, no NCHW<->NHWC transposes.
    x = x_nchw.reshape(Bn, C, HW)
    y = y_nchw.reshape(Bn, C, HW)

    # MXU operand dtype: bf16 weights only pay off (and halve resident VMEM)
    # at large C; keep f32 otherwise for exact parity with the reference.
    mxu_dtype = jnp.bfloat16 if C >= 512 else jnp.float32
    w_op = weight.astype(mxu_dtype)
    b_col = bias.astype(jnp.float32).reshape(C, 1)

    # ---------------- single-pass fused path (small/medium H*W) ------------
    if (not force_two_pass
            and _fused_vmem_bytes(C, HW, io_bytes) <= _FUSED_VMEM_BUDGET):
        out_shape = jax.ShapeDtypeStruct((Bn, C, HW), io_dtype)
        cost = pl.CostEstimate(
            flops=4 * Bn * C * C * HW + 4 * Bn * C * C * 128,
            transcendentals=Bn * C * (HW + 128),
            bytes_accessed=4 * Bn * C * HW * io_bytes + C * C * 4)
        x6, x7 = pl.pallas_call(
            _adff_fused_kernel,
            out_shape=(out_shape, out_shape),
            grid_spec=pltpu.PrefetchScalarGridSpec(
                num_scalar_prefetch=0,
                grid=(Bn,),
                in_specs=[
                    pl.BlockSpec((1, C, HW), lambda b: (b, 0, 0)),
                    pl.BlockSpec((1, C, HW), lambda b: (b, 0, 0)),
                    pl.BlockSpec((C, C), lambda b: (0, 0)),
                    pl.BlockSpec((C, 1), lambda b: (0, 0)),
                ],
                out_specs=[
                    pl.BlockSpec((1, C, HW), lambda b: (b, 0, 0)),
                    pl.BlockSpec((1, C, HW), lambda b: (b, 0, 0)),
                ],
            ),
            compiler_params=pltpu.CompilerParams(
                dimension_semantics=("parallel",),
                vmem_limit_bytes=_VMEM_LIMIT_BYTES),
            cost_estimate=cost,
        )(x, y, w_op, b_col)
        return x6.reshape(Bn, C, H, W), x7.reshape(Bn, C, H, W)

    # ---------------- two-pass tiled path (large H*W) -----------------------
    # Pooled branch hoisted out using linearity of the 1x1 conv:
    #   GAP(conv(x) + conv(y)) == W @ (mean(x) + mean(y)) + 2*b
    # (exact in real arithmetic; FP summation reordered -> ~1e-6 deltas).
    w_f32 = weight.astype(jnp.float32)
    b_f32 = bias.astype(jnp.float32)
    xm = jnp.mean(x, axis=2, dtype=jnp.float32)               # (B, C)
    ym = jnp.mean(y, axis=2, dtype=jnp.float32)
    p2 = (xm + ym) @ w_f32.T + 2.0 * b_f32
    p3 = p2 @ w_f32.T + b_f32
    p4 = jax.nn.sigmoid(p3)
    x5 = (p4 @ w_f32.T + b_f32).reshape(Bn, C, 1)             # (B, C, 1) f32

    T = tile_hint if tile_hint is not None else _choose_tile(C, HW, io_bytes)
    n_tiles = pl.cdiv(HW, T)
    # No padding: Pallas clamps the boundary block's DMAs, so the partial last
    # tile is read short and its out-of-range columns are never written back.

    out_shape = jax.ShapeDtypeStruct((Bn, C, HW), io_dtype)
    cost = pl.CostEstimate(
        flops=4 * Bn * C * C * HW,
        transcendentals=Bn * C * HW,
        bytes_accessed=4 * Bn * C * HW * io_bytes + C * C * 4)

    x6, x7 = pl.pallas_call(
        _adff_tiled_kernel,
        out_shape=(out_shape, out_shape),
        grid_spec=pltpu.PrefetchScalarGridSpec(
            num_scalar_prefetch=0,
            grid=(Bn, n_tiles),
            in_specs=[
                pl.BlockSpec((1, C, T), lambda b, t: (b, 0, t)),
                pl.BlockSpec((1, C, T), lambda b, t: (b, 0, t)),
                pl.BlockSpec((C, C), lambda b, t: (0, 0)),
                pl.BlockSpec((C, 1), lambda b, t: (0, 0)),
                pl.BlockSpec((1, C, 1), lambda b, t: (b, 0, 0)),
            ],
            out_specs=[
                pl.BlockSpec((1, C, T), lambda b, t: (b, 0, t)),
                pl.BlockSpec((1, C, T), lambda b, t: (b, 0, t)),
            ],
        ),
        compiler_params=pltpu.CompilerParams(
            dimension_semantics=("parallel", "parallel"),
            vmem_limit_bytes=_VMEM_LIMIT_BYTES),
        cost_estimate=cost,
    )(x, y, w_op, b_col, x5)

    return x6.reshape(Bn, C, H, W), x7.reshape(Bn, C, H, W)


def adff_reference(x_nchw, y_nchw, weight, bias):
    """Pure-JAX f32 reference mirroring the PyTorch module."""
    wf = weight.astype(jnp.float32)
    bf = bias.astype(jnp.float32)

    def conv1x1(t):  # (B, C, H, W)
        return jnp.einsum('oc,bchw->bohw', wf, t.astype(jnp.float32)) \
            + bf[None, :, None, None]

    cx = conv1x1(x_nchw)
    cy = conv1x1(y_nchw)
    x1 = cx + cy
    bs = jax.nn.sigmoid(x1)
    x2 = jnp.mean(x1, axis=(2, 3), keepdims=True)
    x3 = conv1x1(x2)
    x4 = jax.nn.sigmoid(x3)
    x5 = conv1x1(x4)
    return bs * x5 + cx, bs * x5 + cy


if __name__ == "__main__":
    key = jax.random.PRNGKey(0)
    kx, ky, kw, kb, kx2, ky2 = jax.random.split(key, 6)

    # in_ch must equal out_ch (conv1 is reused on its own output).
    Bn, C = 2, 4
    weight = jax.random.normal(kw, (C, C), dtype=jnp.float32) / jnp.sqrt(C)
    bias = jax.random.normal(kb, (C,), dtype=jnp.float32) * 0.1

    # --- Test 1: fused single-pass kernel (f32) -----------------------------
    H, W = 16, 16
    x = jax.random.normal(kx, (Bn, C, H, W), dtype=jnp.float32)
    y = jax.random.normal(ky, (Bn, C, H, W), dtype=jnp.float32)
    x6, x7 = adff_forward(x, y, weight, bias)
    jax.block_until_ready((x6, x7))
    r6, r7 = adff_reference(x, y, weight, bias)
    assert jnp.allclose(x6, r6, atol=1e-5, rtol=1e-5), float(jnp.max(jnp.abs(x6 - r6)))
    assert jnp.allclose(x7, r7, atol=1e-5, rtol=1e-5), float(jnp.max(jnp.abs(x7 - r7)))

    # --- Test 2: two-pass tiled kernel, partial last tile, no padding -------
    H2, W2 = 12, 12          # HW = 144: not a multiple of the 128-lane tile
    xs2 = jax.random.normal(kx2, (Bn, C, H2, W2), dtype=jnp.float32)
    ys2 = jax.random.normal(ky2, (Bn, C, H2, W2), dtype=jnp.float32)
    x6b, x7b = adff_forward(xs2, ys2, weight, bias, tile_hint=128,
                            force_two_pass=True)
    jax.block_until_ready((x6b, x7b))
    r6b, r7b = adff_reference(xs2, ys2, weight, bias)
    assert jnp.allclose(x6b, r6b, atol=1e-4, rtol=1e-4), float(jnp.max(jnp.abs(x6b - r6b)))
    assert jnp.allclose(x7b, r7b, atol=1e-4, rtol=1e-4), float(jnp.max(jnp.abs(x7b - r7b)))

    # --- Test 3: bf16 I/O path (halves HBM traffic on v6e/v7x) --------------
    xb = x.astype(jnp.bfloat16)
    yb = y.astype(jnp.bfloat16)
    x6c, x7c = adff_forward(xb, yb, weight, bias)
    jax.block_until_ready((x6c, x7c))
    assert jnp.allclose(x6c.astype(jnp.float32), r6, atol=0.1, rtol=0.1)
    assert jnp.allclose(x7c.astype(jnp.float32), r7, atol=0.1, rtol=0.1)

    print("KERNEL_OK")
</pallas_src>

<mosaic_0001>
module attributes {stable_mosaic.version = 11 : i64} {
  func.func @_adff_fused_kernel(%arg0: i32, %arg1: memref<1x4x256xf32, #tpu.memory_space<vmem>>, %arg2: memref<1x4x256xf32, #tpu.memory_space<vmem>>, %arg3: memref<4x4xf32, #tpu.memory_space<vmem>>, %arg4: memref<4x1xf32, #tpu.memory_space<vmem>>, %arg5: memref<1x4x256xf32, #tpu.memory_space<vmem>>, %arg6: memref<1x4x256xf32, #tpu.memory_space<vmem>>) attributes {dimension_semantics = [#tpu.dimension_semantics<parallel>], iteration_bounds = array<i64: 2>, scalar_prefetch = 0 : i64, scratch_operands = 0 : i64, tpu.core_type = #tpu.core_type<tc>, window_params = [{transform_indices = @transform_0, window_bounds = array<i64: 1, 4, 256>}, {transform_indices = @transform_1, window_bounds = array<i64: 1, 4, 256>}, {pipeline_mode = #tpu.pipeline_mode<synchronous>, transform_indices = @transform_2, window_bounds = array<i64: 4, 4>}, {pipeline_mode = #tpu.pipeline_mode<synchronous>, transform_indices = @transform_3, window_bounds = array<i64: 4, 1>}, {transform_indices = @transform_4, window_bounds = array<i64: 1, 4, 256>}, {transform_indices = @transform_5, window_bounds = array<i64: 1, 4, 256>}]} {
    %c0 = arith.constant 0 : index
    %c0_0 = arith.constant 0 : index
    %0 = vector.load %arg3[%c0, %c0_0] : memref<4x4xf32, #tpu.memory_space<vmem>>, vector<4x4xf32>
    %c0_1 = arith.constant 0 : index
    %c0_2 = arith.constant 0 : index
    %1 = vector.load %arg4[%c0_1, %c0_2] : memref<4x1xf32, #tpu.memory_space<vmem>>, vector<4x1xf32>
    %c0_3 = arith.constant 0 : index
    %c0_4 = arith.constant 0 : index
    %c0_5 = arith.constant 0 : index
    %2 = vector.load %arg1[%c0_3, %c0_4, %c0_5] : memref<1x4x256xf32, #tpu.memory_space<vmem>>, vector<1x4x256xf32>
    %3 = vector.shape_cast %2 : vector<1x4x256xf32> to vector<4x256xf32>
    %c0_6 = arith.constant 0 : index
    %c0_7 = arith.constant 0 : index
    %c0_8 = arith.constant 0 : index
    %4 = vector.load %arg2[%c0_6, %c0_7, %c0_8] : memref<1x4x256xf32, #tpu.memory_space<vmem>>, vector<1x4x256xf32>
    %5 = vector.shape_cast %4 : vector<1x4x256xf32> to vector<4x256xf32>
    %cst = arith.constant dense<0.000000e+00> : vector<4x256xf32>
    %6 = tpu.matmul %0, %3, %cst {dimension_numbers = #tpu.dot_dimension_numbers<[1], [0], [0], [1], [0, 0, 1, 1], [], []>} : vector<4x4xf32>, vector<4x256xf32>, vector<4x256xf32> -> vector<4x256xf32>
    %7 = vector.broadcast %1 : vector<4x1xf32> to vector<4x256xf32>
    %8 = arith.addf %6, %7 : vector<4x256xf32>
    %cst_9 = arith.constant dense<0.000000e+00> : vector<4x256xf32>
    %9 = tpu.matmul %0, %5, %cst_9 {dimension_numbers = #tpu.dot_dimension_numbers<[1], [0], [0], [1], [0, 0, 1, 1], [], []>} : vector<4x4xf32>, vector<4x256xf32>, vector<4x256xf32> -> vector<4x256xf32>
    %10 = vector.broadcast %1 : vector<4x1xf32> to vector<4x256xf32>
    %11 = arith.addf %9, %10 : vector<4x256xf32>
    %12 = arith.addf %8, %11 : vector<4x256xf32>
    %13 = arith.negf %12 : vector<4x256xf32>
    %14 = math.exp %13 : vector<4x256xf32>
    %cst_10 = arith.constant 1.000000e+00 : f32
    %15 = vector.broadcast %cst_10 : f32 to vector<4x256xf32>
    %16 = arith.addf %15, %14 : vector<4x256xf32>
    %17 = arith.divf %15, %16 : vector<4x256xf32>
    %cst_11 = arith.constant dense<0.000000e+00> : vector<4xf32>
    %18 = vector.multi_reduction <add>, %12, %cst_11 [1] : vector<4x256xf32> to vector<4xf32>
    %19 = vector.shape_cast %18 : vector<4xf32> to vector<4x1xf32>
    %cst_12 = arith.constant 2.560000e+02 : f32
    %20 = vector.broadcast %cst_12 : f32 to vector<4x1xf32>
    %21 = arith.divf %19, %20 : vector<4x1xf32>
    %22 = vector.shape_cast %21 : vector<4x1xf32> to vector<4x1xf32>
    %23 = vector.broadcast %22 : vector<4x1xf32> to vector<4x128xf32>
    %cst_13 = arith.constant dense<0.000000e+00> : vector<4x128xf32>
    %24 = tpu.matmul %0, %23, %cst_13 {dimension_numbers = #tpu.dot_dimension_numbers<[1], [0], [0], [1], [0, 0, 1, 1], [], []>} : vector<4x4xf32>, vector<4x128xf32>, vector<4x128xf32> -> vector<4x128xf32>
    %25 = vector.broadcast %1 : vector<4x1xf32> to vector<4x128xf32>
    %26 = arith.addf %24, %25 : vector<4x128xf32>
    %27 = arith.negf %26 : vector<4x128xf32>
    %28 = math.exp %27 : vector<4x128xf32>
    %cst_14 = arith.constant 1.000000e+00 : f32
    %29 = vector.broadcast %cst_14 : f32 to vector<4x128xf32>
    %30 = arith.addf %29, %28 : vector<4x128xf32>
    %31 = arith.divf %29, %30 : vector<4x128xf32>
    %cst_15 = arith.constant dense<0.000000e+00> : vector<4x128xf32>
    %32 = tpu.matmul %0, %31, %cst_15 {dimension_numbers = #tpu.dot_dimension_numbers<[1], [0], [0], [1], [0, 0, 1, 1], [], []>} : vector<4x4xf32>, vector<4x128xf32>, vector<4x128xf32> -> vector<4x128xf32>
    %33 = vector.broadcast %1 : vector<4x1xf32> to vector<4x128xf32>
    %34 = arith.addf %32, %33 : vector<4x128xf32>
    %35 = vector.extract_strided_slice %34 {offsets = [0, 0], sizes = [4, 1], strides = [1, 1]} : vector<4x128xf32> to vector<4x1xf32>
    %36 = vector.broadcast %35 : vector<4x1xf32> to vector<4x256xf32>
    %37 = arith.mulf %17, %36 : vector<4x256xf32>
    %38 = arith.addf %37, %8 : vector<4x256xf32>
    %c0_16 = arith.constant 0 : index
    %c0_17 = arith.constant 0 : index
    %c0_18 = arith.constant 0 : index
    %39 = vector.load %arg5[%c0_16, %c0_17, %c0_18] : memref<1x4x256xf32, #tpu.memory_space<vmem>>, vector<1x4x256xf32>
    %40 = vector.shape_cast %39 : vector<1x4x256xf32> to vector<4x256xf32>
    %41 = vector.shape_cast %38 : vector<4x256xf32> to vector<1x4x256xf32>
    tpu.vector_store %arg5[%c0_16, %c0_17, %c0_18], %41 {strides = array<i32>} : memref<1x4x256xf32, #tpu.memory_space<vmem>>, vector<1x4x256xf32>,
    %42 = arith.addf %37, %11 : vector<4x256xf32>
    %c0_19 = arith.constant 0 : index
    %c0_20 = arith.constant 0 : index
    %c0_21 = arith.constant 0 : index
    %43 = vector.load %arg6[%c0_19, %c0_20, %c0_21] : memref<1x4x256xf32, #tpu.memory_space<vmem>>, vector<1x4x256xf32>
    %44 = vector.shape_cast %43 : vector<1x4x256xf32> to vector<4x256xf32>
    %45 = vector.shape_cast %42 : vector<4x256xf32> to vector<1x4x256xf32>
    tpu.vector_store %arg6[%c0_19, %c0_20, %c0_21], %45 {strides = array<i32>} : memref<1x4x256xf32, #tpu.memory_space<vmem>>, vector<1x4x256xf32>,
    return
  }
  func.func @transform_0(%arg0: i32) -> (i32, i32, i32) {
    %c0_i32 = arith.constant 0 : i32
    %c0_i32_0 = arith.constant 0 : i32
    %c0_i32_1 = arith.constant 0 : i32
    return %arg0, %c0_i32, %c0_i32_0 : i32, i32, i32
  }
  func.func @transform_1(%arg0: i32) -> (i32, i32, i32) {
    %c0_i32 = arith.constant 0 : i32
    %c0_i32_0 = arith.constant 0 : i32
    %c0_i32_1 = arith.constant 0 : i32
    return %arg0, %c0_i32, %c0_i32_0 : i32, i32, i32
  }
  func.func @transform_2(%arg0: i32) -> (i32, i32) {
    %c0_i32 = arith.constant 0 : i32
    %c0_i32_0 = arith.constant 0 : i32
    %c0_i32_1 = arith.constant 0 : i32
    return %c0_i32, %c0_i32_0 : i32, i32
  }
  func.func @transform_3(%arg0: i32) -> (i32, i32) {
    %c0_i32 = arith.constant 0 : i32
    %c0_i32_0 = arith.constant 0 : i32
    %c0_i32_1 = arith.constant 0 : i32
    return %c0_i32, %c0_i32_0 : i32, i32
  }
  func.func @transform_4(%arg0: i32) -> (i32, i32, i32) {
    %c0_i32 = arith.constant 0 : i32
    %c0_i32_0 = arith.constant 0 : i32
    %c0_i32_1 = arith.constant 0 : i32
    return %arg0, %c0_i32, %c0_i32_0 : i32, i32, i32
  }
  func.func @transform_5(%arg0: i32) -> (i32, i32, i32) {
    %c0_i32 = arith.constant 0 : i32
    %c0_i32_0 = arith.constant 0 : i32
    %c0_i32_1 = arith.constant 0 : i32
    return %arg0, %c0_i32, %c0_i32_0 : i32, i32, i32
  }
}

</mosaic_0001>

<llo_original>
// kernel: tpu_custom_call.1
$region0: #{tpu_custom_call.1}
  #allocation0 [shape = 'u32[]', space=smem, size = 0x4, offset = 0x4, fixed_abs, tag = 'smem constant byte address 0x4 - core index']
  #allocation1 [shape = 'u32[144,128]{1,0:T(1,128)}', space=vmem, size = 0x12000, scoped, tag = 'internal scratch']
  %s0 = inlined_call_operand.hbm [shape: f32[2,4,256], index: 0, kind: input, shape index: {}]
  %s1 = inlined_call_operand.hbm [shape: f32[2,4,256], index: 1, kind: input, shape index: {}]
  %s2 = inlined_call_operand.vmem [shape: f32[4,4], index: 2, kind: input, shape index: {}]
  %s3 = inlined_call_operand.vmem [shape: f32[4,1], index: 3, kind: input, shape index: {}]
  %s4 = inlined_call_operand.hbm [shape: f32[2,4,256], index: 4, kind: output, shape index: {0}]
  %s5 = inlined_call_operand.hbm [shape: f32[2,4,256], index: 5, kind: output, shape index: {1}]
  %6 = xla_tuple %s4, %s5
  %s7 = sld [smem:[#allocation0]]
  $region65: #{tpu_custom_call.1} parent=0
    _
  %s9 = ssub.s32 1, %s7
  %s10 = scalar_select 0, %s9, %s7
  $region1: #{tpu_custom_call.1} parent=0
    #allocation2 [shape = 'u8[8192]{0}', space=vmem, size = 0x2000, scoped, tag = 'input window, operand 0']
    #allocation3 [shape = 's32[2]{0}', space=sflag, size = 0x8, scoped, tag = 'scoped memory for tpu_custom_call.1']
    #allocation4 [shape = 's32[2]{0}', space=sflag, size = 0x8, scoped, tag = 'scoped memory for tpu_custom_call.1']
    #allocation5 [shape = 'u8[8192]{0}', space=vmem, size = 0x2000, scoped, tag = 'input window, operand 1']
    #allocation6 [shape = 's32[2]{0}', space=sflag, size = 0x8, scoped, tag = 'scoped memory for tpu_custom_call.1']
    #allocation7 [shape = 'u8[8192]{0}', space=vmem, size = 0x2000, scoped, tag = 'output window, operand 0']
    #allocation8 [shape = 'u8[8192]{0}', space=vmem, size = 0x2000, scoped, tag = 'output window, operand 1']
    #allocation9 [shape = 's32[2]{0}', space=sflag, size = 0x8, scoped, tag = 'scoped memory for tpu_custom_call.1']
    %11 = vsyncpa [#allocation3], 0
    %s12 = scalar_lea.sflag [#allocation3], 1
    %13 = vsyncpa %s12, 0
    %14 = vsyncpa [#allocation6], 0
    %s15 = scalar_lea.sflag [#allocation6], 1
    %16 = vsyncpa %s15, 0
    %17 = vsyncpa [#allocation4], 0
    %s18 = scalar_lea.sflag [#allocation4], 1
    %19 = vsyncpa %s18, 0
    %20 = vsyncpa [#allocation9], 0
    %s21 = scalar_lea.sflag [#allocation9], 1
    %22 = vsyncpa %s21, 0
    loop: start=0, step=1, limit=4
    $region2: #{tpu_custom_call.1} parent=1 // loop_pre_header
      _
    $region3: #{tpu_custom_call.1} parent=1 // loop_header
      %s24 = sphi 0, %s28
      %p25 = scmp.ge.s32.totalorder %s24, 4
      %s34 = sphi 0, %s36
      %s37 = sphi 0, %s34
      %s38 = sphi 0, %s37
      %s54 = sphi 0, %s38
      %s60 = sphi 0, %s62
      %s63 = sphi 0, %s60
      %s64 = sphi 0, %s63
      %s80 = sphi 0, %s64
      %s84 = sphi 0, %s84
      %s86 = sphi 0, %s84
      %s87 = sphi 0, %s86
      %s101 = sphi 0, %s87
      %s105 = sphi 0, %s105
      %s107 = sphi 0, %s105
      %s108 = sphi 0, %s107
      %s122 = sphi 0, %s108
      %s128 = sphi 0, %s130
      %s131 = sphi 0, %s128
      %s132 = sphi 0, %s131
      %s148 = sphi 0, %s132
      %s154 = sphi 0, %s156
      %s157 = sphi 0, %s154
      %s158 = sphi 0, %s157
      %s174 = sphi 0, %s158
    $region4: #{tpu_custom_call.1} parent=1 // loop_header_branch
      %27 = sbr.rel (%p25) target = $region8
    $region5: #{tpu_custom_call.1} parent=1 // loop_body
      %s29 = ssub.s32 %s24, 1
      %s30 = ssub.s32 %s24, 2
      %s31 = sadd.s32 %s24, 1
      %s32 = ssub.s32 %s24, %s31
      %p33 = scmp.eq.s32.totalorder %s32, 0
      %s35 = sadd.s32 %s34, 1
      %s36 = scalar_select %p33, %s34, %s35
      %p39 = pneg %p33
      %p40 = scmp.eq.s32.totalorder %s24, 1
      %p41 = por %p39, %p40
      %p42 = scmp.ne.s32.totalorder %s34, %s37
      %p43 = scmp.eq.s32.totalorder %s24, 0
      %p44 = por %p42, %p43
      %p45 = scmp.ne.s32.totalorder %s34, %s37
      %p46 = scmp.eq.s32.totalorder %s29, 1
      %p47 = por %p45, %p46
      %p48 = scmp.ne.s32.totalorder %s37, %s38
      %p49 = scmp.eq.s32.totalorder %s29, 0
      %p50 = por %p48, %p49
      %p51 = scmp.ne.s32.totalorder %s37, %s38
      %p52 = scmp.eq.s32.totalorder %s30, 1
      %p53 = por %p51, %p52
      %p55 = scmp.ne.s32.totalorder %s38, %s54
      %p56 = scmp.eq.s32.totalorder %s30, 0
      %p57 = por %p55, %p56
      %s58 = ssub.s32 %s24, %s31
      %p59 = scmp.eq.s32.totalorder %s58, 0
      %s61 = sadd.s32 %s60, 1
      %s62 = scalar_select %p59, %s60, %s61
      %p65 = pneg %p59
      %p66 = scmp.eq.s32.totalorder %s24, 1
      %p67 = por %p65, %p66
      %p68 = scmp.ne.s32.totalorder %s60, %s63
      %p69 = scmp.eq.s32.totalorder %s24, 0
      %p70 = por %p68, %p69
      %p71 = scmp.ne.s32.totalorder %s60, %s63
      %p72 = scmp.eq.s32.totalorder %s29, 1
      %p73 = por %p71, %p72
      %p74 = scmp.ne.s32.totalorder %s63, %s64
      %p75 = scmp.eq.s32.totalorder %s29, 0
      %p76 = por %p74, %p75
      %p77 = scmp.ne.s32.totalorder %s63, %s64
      %p78 = scmp.eq.s32.totalorder %s30, 1
      %p79 = por %p77, %p78
      %p81 = scmp.ne.s32.totalorder %s64, %s80
      %p82 = scmp.eq.s32.totalorder %s30, 0
      %p83 = por %p81, %p82
      %s85 = sadd.s32 %s84, 1
      %p88 = scmp.eq.s32.totalorder %s24, 1
      %p89 = scmp.ne.s32.totalorder %s84, %s86
      %p90 = scmp.eq.s32.totalorder %s24, 0
      %p91 = por %p89, %p90
      %p92 = scmp.ne.s32.totalorder %s84, %s86
      %p93 = scmp.eq.s32.totalorder %s29, 1
      %p94 = por %p92, %p93
      %p95 = scmp.ne.s32.totalorder %s86, %s87
      %p96 = scmp.eq.s32.totalorder %s29, 0
      %p97 = por %p95, %p96
      %p98 = scmp.ne.s32.totalorder %s86, %s87
      %p99 = scmp.eq.s32.totalorder %s30, 1
      %p100 = por %p98, %p99
      %p102 = scmp.ne.s32.totalorder %s87, %s101
      %p103 = scmp.eq.s32.totalorder %s30, 0
      %p104 = por %p102, %p103
      %s106 = sadd.s32 %s105, 1
      %p109 = scmp.eq.s32.totalorder %s24, 1
      %p110 = scmp.ne.s32.totalorder %s105, %s107
      %p111 = scmp.eq.s32.totalorder %s24, 0
      %p112 = por %p110, %p111
      %p113 = scmp.ne.s32.totalorder %s105, %s107
      %p114 = scmp.eq.s32.totalorder %s29, 1
      %p115 = por %p113, %p114
      %p116 = scmp.ne.s32.totalorder %s107, %s108
      %p117 = scmp.eq.s32.totalorder %s29, 0
      %p118 = por %p116, %p117
      %p119 = scmp.ne.s32.totalorder %s107, %s108
      %p120 = scmp.eq.s32.totalorder %s30, 1
      %p121 = por %p119, %p120
      %p123 = scmp.ne.s32.totalorder %s108, %s122
      %p124 = scmp.eq.s32.totalorder %s30, 0
      %p125 = por %p123, %p124
      %s126 = ssub.s32 %s24, %s31
      %p127 = scmp.eq.s32.totalorder %s126, 0
      %s129 = sadd.s32 %s128, 1
      %s130 = scalar_select %p127, %s128, %s129
      %p133 = pneg %p127
      %p134 = scmp.eq.s32.totalorder %s24, 1
      %p135 = por %p133, %p134
      %p136 = scmp.ne.s32.totalorder %s128, %s131
      %p137 = scmp.eq.s32.totalorder %s24, 0
      %p138 = por %p136, %p137
      %p139 = scmp.ne.s32.totalorder %s128, %s131
      %p140 = scmp.eq.s32.totalorder %s29, 1
      %p141 = por %p139, %p140
      %p142 = scmp.ne.s32.totalorder %s131, %s132
      %p143 = scmp.eq.s32.totalorder %s29, 0
      %p144 = por %p142, %p143
      %p145 = scmp.ne.s32.totalorder %s131, %s132
      %p146 = scmp.eq.s32.totalorder %s30, 1
      %p147 = por %p145, %p146
      %p149 = scmp.ne.s32.totalorder %s132, %s148
      %p150 = scmp.eq.s32.totalorder %s30, 0
      %p151 = por %p149, %p150
      %s152 = ssub.s32 %s24, %s31
      %p153 = scmp.eq.s32.totalorder %s152, 0
      %s155 = sadd.s32 %s154, 1
      %s156 = scalar_select %p153, %s154, %s155
      %p159 = pneg %p153
      %p160 = scmp.eq.s32.totalorder %s24, 1
      %p161 = por %p159, %p160
      %p162 = scmp.ne.s32.totalorder %s154, %s157
      %p163 = scmp.eq.s32.totalorder %s24, 0
      %p164 = por %p162, %p163
      %p165 = scmp.ne.s32.totalorder %s154, %s157
      %p166 = scmp.eq.s32.totalorder %s29, 1
      %p167 = por %p165, %p166
      %p168 = scmp.ne.s32.totalorder %s157, %s158
      %p169 = scmp.eq.s32.totalorder %s29, 0
      %p170 = por %p168, %p169
      %p171 = scmp.ne.s32.totalorder %s157, %s158
      %p172 = scmp.eq.s32.totalorder %s30, 1
      %p173 = por %p171, %p172
      %p175 = scmp.ne.s32.totalorder %s158, %s174
      %p176 = scmp.eq.s32.totalorder %s30, 0
      %p177 = por %p175, %p176
      %p178 = scmp.le.s32.totalorder 1, %s24
      %p179 = scmp.lt.s32.totalorder %s24, 3
      %p180 = pnand %p178, %p179
      %p181 = pneg %p180
      // Predicated region
      $region9: #{tpu_custom_call.1} parent=5 // pred_check
        _
      $region10: #{tpu_custom_call.1} parent=5 // pred_check_branch
        %183 = sbr.rel (%p180) target = $region12
      $region11: #{tpu_custom_call.1} parent=5 // pred_region
        %s184 = ssub.s32 %s24, 1
        // Predicated region
        $region13: #{tpu_custom_call.1} parent=11 // pred_check
          %p185 = pneg %p97
        $region14: #{tpu_custom_call.1} parent=11 // pred_check_branch
          %187 = sbr.rel (%p185) target = $region16
        $region15: #{tpu_custom_call.1} parent=11 // pred_region
          _
        $region16: #{tpu_custom_call.1} parent=11 // pred_fallthru
          _
        // Predicated region
        $region17: #{tpu_custom_call.1} parent=11 // pred_check
          %p188 = pneg %p118
        $region18: #{tpu_custom_call.1} parent=11 // pred_check_branch
          %190 = sbr.rel (%p188) target = $region20
        $region19: #{tpu_custom_call.1} parent=11 // pred_region
          _
        $region20: #{tpu_custom_call.1} parent=11 // pred_fallthru
          _
      $region12: #{tpu_custom_call.1} parent=5 // pred_fallthru
        _
      %p191 = scmp.lt.s32.totalorder %s24, 2
      // Predicated region
      $region21: #{tpu_custom_call.1} parent=5 // pred_check
        %p192 = pneg %p191
      $region22: #{tpu_custom_call.1} parent=5 // pred_check_branch
        %194 = sbr.rel (%p192) target = $region24
      $region23: #{tpu_custom_call.1} parent=5 // pred_region
        // Predicated region
        $region25: #{tpu_custom_call.1} parent=23 // pred_check
          %p195 = pneg %p44
        $region26: #{tpu_custom_call.1} parent=23 // pred_check_branch
          %197 = sbr.rel (%p195) target = $region28
        $region27: #{tpu_custom_call.1} parent=23 // pred_region
          %s198 = sand.u32 %s34, 1
          %s199 = scalar_lea.sflag [#allocation3], %s198
          %s200 = sand.u32 %s34, 1
          %s201 = smul.addr %s200, 8
          %s202 = scalar_lea.vmem [#allocation2], %s201
          %s204 = ssub.s32 128, 128
          %205 = vsyncadd %s199, %s204
          %s206 = smul.addr %s24, 2
          %s207 = smul.addr %s206, 64
          %s208 = scalar_lea.hbm %s0, %s207
          %s210 = sshll.u32 %s202, 4
          %s211 = int_to_ptr.vmem [resolvable:$true] %s210
          %213 = dma.hbm_to_vmem [thread:$0]  %s208, 128, %s211, %s199
        $region28: #{tpu_custom_call.1} parent=23 // pred_fallthru
          _
        // Predicated region
        $region29: #{tpu_custom_call.1} parent=23 // pred_check
          %p214 = pneg %p70
        $region30: #{tpu_custom_call.1} parent=23 // pred_check_branch
          %216 = sbr.rel (%p214) target = $region32
        $region31: #{tpu_custom_call.1} parent=23 // pred_region
          %s217 = sand.u32 %s60, 1
          %s218 = scalar_lea.sflag [#allocation6], %s217
          %s219 = sand.u32 %s60, 1
          %s220 = smul.addr %s219, 8
          %s221 = scalar_lea.vmem [#allocation5], %s220
          %s223 = ssub.s32 128, 128
          %224 = vsyncadd %s218, %s223
          %s225 = smul.addr %s24, 2
          %s226 = smul.addr %s225, 64
          %s227 = scalar_lea.hbm %s1, %s226
          %s229 = sshll.u32 %s221, 4
          %s230 = int_to_ptr.vmem [resolvable:$true] %s229
          %232 = dma.hbm_to_vmem [thread:$0]  %s227, 128, %s230, %s218
        $region32: #{tpu_custom_call.1} parent=23 // pred_fallthru
          _
      $region24: #{tpu_custom_call.1} parent=5 // pred_fallthru
        _
      %p233 = scmp.le.s32.totalorder 1, %s24
      %p234 = scmp.lt.s32.totalorder %s24, 3
      %p235 = pnand %p233, %p234
      %p236 = pneg %p235
      // Predicated region
      $region33: #{tpu_custom_call.1} parent=5 // pred_check
        _
      $region34: #{tpu_custom_call.1} parent=5 // pred_check_branch
        %238 = sbr.rel (%p235) target = $region36
      $region35: #{tpu_custom_call.1} parent=5 // pred_region
        %s239 = ssub.s32 %s24, 1
        %s240 = sand.u32 %s37, 1
        %s241 = scalar_lea.sflag [#allocation3], %s240
        %s242 = sand.u32 %s37, 1
        %s243 = smul.addr %s242, 8
        %s244 = scalar_lea.vmem [#allocation2], %s243
        // Predicated region
        $region37: #{tpu_custom_call.1} parent=35 // pred_check
          %p245 = pneg %p50
        $region38: #{tpu_custom_call.1} parent=35 // pred_check_branch
          %247 = sbr.rel (%p245) target = $region40
        $region39: #{tpu_custom_call.1} parent=35 // pred_region
          %248 = dma.done %s241, 128
        $region40: #{tpu_custom_call.1} parent=35 // pred_fallthru
          _
        %s249 = sand.u32 %s63, 1
        %s250 = scalar_lea.sflag [#allocation6], %s249
        %s251 = sand.u32 %s63, 1
        %s252 = smul.addr %s251, 8
        %s253 = scalar_lea.vmem [#allocation5], %s252
        // Predicated region
        $region41: #{tpu_custom_call.1} parent=35 // pred_check
          %p254 = pneg %p76
        $region42: #{tpu_custom_call.1} parent=35 // pred_check_branch
          %256 = sbr.rel (%p254) target = $region44
        $region43: #{tpu_custom_call.1} parent=35 // pred_region
          %257 = dma.done %s250, 128
        $region44: #{tpu_custom_call.1} parent=35 // pred_fallthru
          _
        %s258 = sand.u32 %s37, 1
        %s259 = scalar_lea.sflag [#allocation3], %s258
        %s260 = sand.u32 %s37, 1
        %s261 = smul.addr %s260, 8
        %s262 = scalar_lea.vmem [#allocation2], %s261
        %p263 = pneg %p50
        %p264 = pneg %p47
        %s265 = sand.u32 %s63, 1
        %s266 = scalar_lea.sflag [#allocation6], %s265
        %s267 = sand.u32 %s63, 1
        %s268 = smul.addr %s267, 8
        %s269 = scalar_lea.vmem [#allocation5], %s268
        %p270 = pneg %p76
        %p271 = pneg %p73
        %p272 = pneg %p97
        %p273 = pneg %p94
        %p274 = pneg %p118
        %p275 = pneg %p115
        %p276 = pneg %p144
        %p277 = pneg %p141
        %s278 = sand.u32 %s131, 1
        %s279 = scalar_lea.sflag [#allocation4], %s278
        %s280 = sand.u32 %s131, 1
        %s281 = smul.addr %s280, 8
        %s282 = scalar_lea.vmem [#allocation7], %s281
        %p283 = pneg %p170
        %p284 = pneg %p167
        %s285 = sand.u32 %s157, 1
        %s286 = scalar_lea.sflag [#allocation9], %s285
        %s287 = sand.u32 %s157, 1
        %s288 = smul.addr %s287, 8
        %s289 = scalar_lea.vmem [#allocation8], %s288
        %v290 = vld [vmem:[%s2] sm:$0xf]
        %v291 = vld [vmem:[%s3] sm:$0xf]
        %v292 = vld [vmem:[%s244] sm:$0xff]
        %v293 = vld [vmem:[%s253] sm:$0xff]
        %295 = vset.pattern.permute.xlu0 0
        %296 = vperm.xlu0 %295, %v291
        %v297 = vpop.permute.xlu0 %296
        %v300 = vcombine.high %v292, %v292
        %vm301 = vcmask 31744
        %v303 = vsel %vm301, %v290, 0
        %vm305 = vcmask 1043456
        %v306 = vsel %vm305, %v292, 0
        %v308 = vsel %vm305, %v300, 0
        %310 = vmatprep.subr.mxu0 %v308
        %311 = vmatpush1.msra.mxu0 %v306
        %312 = vmatprep.subr.mxu0 0.0
        %313 = vmatpush1.msra.mxu0 0.0
        %314 = vmatprep.subr.mxu0 0.0
        %315 = vmatpush1.msra.mxu0 0.0
        %316 = vmatprep.subr.mxu0 0.0
        %317 = vmatpush1.msra.mxu0 0.0
        %318 = vmatprep.subr.mxu0 0.0
        %319 = vmatpush1.msra.mxu0 0.0
        %320 = vmatprep.subr.mxu0 0.0
        %321 = vmatpush1.msra.mxu0 0.0
        %322 = vmatprep.subr.mxu0 0.0
        %323 = vmatpush1.msra.mxu0 0.0
        %324 = vmatprep.subr.mxu0 0.0
        %325 = vmatpush1.msra.mxu0 0.0
        %326 = vmatprep.subr.mxu0 0.0
        %327 = vmatpush1.msra.mxu0 0.0
        %328 = vmatprep.subr.mxu0 0.0
        %329 = vmatpush1.msra.mxu0 0.0
        %330 = vmatprep.subr.mxu0 0.0
        %331 = vmatpush1.msra.mxu0 0.0
        %332 = vmatprep.subr.mxu0 0.0
        %333 = vmatpush1.msra.mxu0 0.0
        %334 = vmatprep.subr.mxu0 0.0
        %335 = vmatpush1.msra.mxu0 0.0
        %336 = vmatprep.subr.mxu0 0.0
        %337 = vmatpush1.msra.mxu0 0.0
        %338 = vmatprep.subr.mxu0 0.0
        %339 = vmatpush1.msra.mxu0 0.0
        %340 = vmatprep.subr.mxu0 0.0
        %341 = vmatpush1.msra.mxu0 0.0
        %342 = vmatprep.subr.mxu0 0.0
        %343 = vmatpush1.msra.mxu0 0.0
        %344 = vmatprep.subr.mxu0 0.0
        %345 = vmatpush1.msra.mxu0 0.0
        %346 = vmatprep.subr.mxu0 0.0
        %347 = vmatpush1.msra.mxu0 0.0
        %348 = vmatprep.subr.mxu0 0.0
        %349 = vmatpush1.msra.mxu0 0.0
        %350 = vmatprep.subr.mxu0 0.0
        %351 = vmatpush1.msra.mxu0 0.0
        %352 = vmatprep.subr.mxu0 0.0
        %353 = vmatpush1.msra.mxu0 0.0
        %354 = vmatprep.subr.mxu0 0.0
        %355 = vmatpush1.msra.mxu0 0.0
        %356 = vmatprep.subr.mxu0 0.0
        %357 = vmatpush1.msra.mxu0 0.0
        %358 = vmatprep.subr.mxu0 0.0
        %359 = vmatpush1.msra.mxu0 0.0
        %360 = vmatprep.subr.mxu0 0.0
        %361 = vmatpush1.msra.mxu0 0.0
        %362 = vmatprep.subr.mxu0 0.0
        %363 = vmatpush1.msra.mxu0 0.0
        %364 = vmatprep.subr.mxu0 0.0
        %365 = vmatpush1.msra.mxu0 0.0
        %366 = vmatprep.subr.mxu0 0.0
        %367 = vmatpush1.msra.mxu0 0.0
        %368 = vmatprep.subr.mxu0 0.0
        %369 = vmatpush1.msra.mxu0 0.0
        %370 = vmatprep.subr.mxu0 0.0
        %371 = vmatpush1.msra.mxu0 0.0
        %372 = vmatprep.subr.mxu0 0.0
        %373 = vmatpush1.msra.mxu0 0.0
        %374 = vmatprep.mubr.f32.mxu0 0.0
        %375 = vmatmul.mubr.f32.gmra.mrb[0].mxu0 %v303
        %v376 = vpop.f32.mrb[0].mxu0
        %v377 = vadd.f32 %v297, %v376
        %v378 = vpop.f32.mrb[0].mxu0
        %v379 = vadd.f32 %v297, %v378
        %380 = vdwg.mxu0
        %v382 = vcombine.high %v293, %v293
        %v383 = vsel %vm305, %v293, 0
        %v385 = vsel %vm305, %v382, 0
        %387 = vmatprep.subr.mxu0 %v385
        %388 = vmatpush1.msra.mxu0 %v383
        %389 = vmatprep.subr.mxu0 0.0
        %390 = vmatpush1.msra.mxu0 0.0
        %391 = vmatprep.subr.mxu0 0.0
        %392 = vmatpush1.msra.mxu0 0.0
        %393 = vmatprep.subr.mxu0 0.0
        %394 = vmatpush1.msra.mxu0 0.0
        %395 = vmatprep.subr.mxu0 0.0
        %396 = vmatpush1.msra.mxu0 0.0
        %397 = vmatprep.subr.mxu0 0.0
        %398 = vmatpush1.msra.mxu0 0.0
        %399 = vmatprep.subr.mxu0 0.0
        %400 = vmatpush1.msra.mxu0 0.0
        %401 = vmatprep.subr.mxu0 0.0
        %402 = vmatpush1.msra.mxu0 0.0
        %403 = vmatprep.subr.mxu0 0.0
        %404 = vmatpush1.msra.mxu0 0.0
        %405 = vmatprep.subr.mxu0 0.0
        %406 = vmatpush1.msra.mxu0 0.0
        %407 = vmatprep.subr.mxu0 0.0
        %408 = vmatpush1.msra.mxu0 0.0
        %409 = vmatprep.subr.mxu0 0.0
        %410 = vmatpush1.msra.mxu0 0.0
        %411 = vmatprep.subr.mxu0 0.0
        %412 = vmatpush1.msra.mxu0 0.0
        %413 = vmatprep.subr.mxu0 0.0
        %414 = vmatpush1.msra.mxu0 0.0
        %415 = vmatprep.subr.mxu0 0.0
        %416 = vmatpush1.msra.mxu0 0.0
        %417 = vmatprep.subr.mxu0 0.0
        %418 = vmatpush1.msra.mxu0 0.0
        %419 = vmatprep.subr.mxu0 0.0
        %420 = vmatpush1.msra.mxu0 0.0
        %421 = vmatprep.subr.mxu0 0.0
        %422 = vmatpush1.msra.mxu0 0.0
        %423 = vmatprep.subr.mxu0 0.0
        %424 = vmatpush1.msra.mxu0 0.0
        %425 = vmatprep.subr.mxu0 0.0
        %426 = vmatpush1.msra.mxu0 0.0
        %427 = vmatprep.subr.mxu0 0.0
        %428 = vmatpush1.msra.mxu0 0.0
        %429 = vmatprep.subr.mxu0 0.0
        %430 = vmatpush1.msra.mxu0 0.0
        %431 = vmatprep.subr.mxu0 0.0
        %432 = vmatpush1.msra.mxu0 0.0
        %433 = vmatprep.subr.mxu0 0.0
        %434 = vmatpush1.msra.mxu0 0.0
        %435 = vmatprep.subr.mxu0 0.0
        %436 = vmatpush1.msra.mxu0 0.0
        %437 = vmatprep.subr.mxu0 0.0
        %438 = vmatpush1.msra.mxu0 0.0
        %439 = vmatprep.subr.mxu0 0.0
        %440 = vmatpush1.msra.mxu0 0.0
        %441 = vmatprep.subr.mxu0 0.0
        %442 = vmatpush1.msra.mxu0 0.0
        %443 = vmatprep.subr.mxu0 0.0
        %444 = vmatpush1.msra.mxu0 0.0
        %445 = vmatprep.subr.mxu0 0.0
        %446 = vmatpush1.msra.mxu0 0.0
        %447 = vmatprep.subr.mxu0 0.0
        %448 = vmatpush1.msra.mxu0 0.0
        %449 = vmatprep.subr.mxu0 0.0
        %450 = vmatpush1.msra.mxu0 0.0
        %451 = vmatprep.mubr.f32.mxu0 0.0
        %452 = vmatmul.mubr.f32.gmra.mrb[0].mxu0 %v303
        %v453 = vpop.f32.mrb[0].mxu0
        %v454 = vadd.f32 %v297, %v453
        %v455 = vpop.f32.mrb[0].mxu0
        %v456 = vadd.f32 %v297, %v455
        %457 = vdwg.mxu0
        %v458 = vadd.f32 %v377, %v454
        %v459 = vadd.f32 %v379, %v456
        %v460 = vxor.u32 %v458, 2147483648
        %v461 = vxor.u32 %v459, 2147483648
        %v462 = vmul.f32 %v460, 1.442695
        %v463 = vpow.pop %v462
        %v464 = vmul.f32 %v461, 1.442695
        %v465 = vpow.pop %v464
        %v466 = vadd.f32 %v463, 1.0
        %v467 = vadd.f32 %v465, 1.0
        %v468 = vrcp.pop %v466
        %v469 = vmul.f32 1.0, %v468
        %v470 = vrcp.pop %v467
        %v471 = vmul.f32 1.0, %v470
        %v472 = vsel %vm305, %v458, 0.0
        %v473 = vsel %vm305, %v459, 0.0
        %v474 = vadd.f32 %v472, %v473
        %475 = vadd.xlane.f32.xlu0 %v474
        %v476 = vpop.xlane.xlu0 %475
        %v477 = vrcp.pop 256.0
        %v478 = vmul.f32 %v476, %v477
        %v480 = vsel %vm305, %v478, 0
        %482 = vmatprep.subr.mxu0 0.0
        %483 = vmatpush1.msra.mxu0 %v480
        %484 = vmatprep.subr.mxu0 0.0
        %485 = vmatpush1.msra.mxu0 0.0
        %486 = vmatprep.subr.mxu0 0.0
        %487 = vmatpush1.msra.mxu0 0.0
        %488 = vmatprep.subr.mxu0 0.0
        %489 = vmatpush1.msra.mxu0 0.0
        %490 = vmatprep.subr.mxu0 0.0
        %491 = vmatpush1.msra.mxu0 0.0
        %492 = vmatprep.subr.mxu0 0.0
        %493 = vmatpush1.msra.mxu0 0.0
        %494 = vmatprep.subr.mxu0 0.0
        %495 = vmatpush1.msra.mxu0 0.0
        %496 = vmatprep.subr.mxu0 0.0
        %497 = vmatpush1.msra.mxu0 0.0
        %498 = vmatprep.subr.mxu0 0.0
        %499 = vmatpush1.msra.mxu0 0.0
        %500 = vmatprep.subr.mxu0 0.0
        %501 = vmatpush1.msra.mxu0 0.0
        %502 = vmatprep.subr.mxu0 0.0
        %503 = vmatpush1.msra.mxu0 0.0
        %504 = vmatprep.subr.mxu0 0.0
        %505 = vmatpush1.msra.mxu0 0.0
        %506 = vmatprep.subr.mxu0 0.0
        %507 = vmatpush1.msra.mxu0 0.0
        %508 = vmatprep.subr.mxu0 0.0
        %509 = vmatpush1.msra.mxu0 0.0
        %510 = vmatprep.subr.mxu0 0.0
        %511 = vmatpush1.msra.mxu0 0.0
        %512 = vmatprep.subr.mxu0 0.0
        %513 = vmatpush1.msra.mxu0 0.0
        %514 = vmatprep.subr.mxu0 0.0
        %515 = vmatpush1.msra.mxu0 0.0
        %516 = vmatprep.subr.mxu0 0.0
        %517 = vmatpush1.msra.mxu0 0.0
        %518 = vmatprep.subr.mxu0 0.0
        %519 = vmatpush1.msra.mxu0 0.0
        %520 = vmatprep.subr.mxu0 0.0
        %521 = vmatpush1.msra.mxu0 0.0
        %522 = vmatprep.subr.mxu0 0.0
        %523 = vmatpush1.msra.mxu0 0.0
        %524 = vmatprep.subr.mxu0 0.0
        %525 = vmatpush1.msra.mxu0 0.0
        %526 = vmatprep.subr.mxu0 0.0
        %527 = vmatpush1.msra.mxu0 0.0
        %528 = vmatprep.subr.mxu0 0.0
        %529 = vmatpush1.msra.mxu0 0.0
        %530 = vmatprep.subr.mxu0 0.0
        %531 = vmatpush1.msra.mxu0 0.0
        %532 = vmatprep.subr.mxu0 0.0
        %533 = vmatpush1.msra.mxu0 0.0
        %534 = vmatprep.subr.mxu0 0.0
        %535 = vmatpush1.msra.mxu0 0.0
        %536 = vmatprep.subr.mxu0 0.0
        %537 = vmatpush1.msra.mxu0 0.0
        %538 = vmatprep.subr.mxu0 0.0
        %539 = vmatpush1.msra.mxu0 0.0
        %540 = vmatprep.subr.mxu0 0.0
        %541 = vmatpush1.msra.mxu0 0.0
        %542 = vmatprep.subr.mxu0 0.0
        %543 = vmatpush1.msra.mxu0 0.0
        %544 = vmatprep.subr.mxu0 0.0
        %545 = vmatpush1.msra.mxu0 0.0
        %546 = vmatprep.mubr.f32.mxu0 0.0
        %547 = vmatmul.mubr.f32.gmra.mrb[0].mxu0 %v303
        %v548 = vpop.f32.mrb[0].mxu0
        %v549 = vadd.f32 %v297, %v548
        %v550 = vpop.f32.mrb[0].mxu0
        %551 = vdwg.mxu0
        %v552 = vxor.u32 %v549, 2147483648
        %v553 = vmul.f32 %v552, 1.442695
        %v554 = vpow.pop %v553
        %v555 = vadd.f32 %v554, 1.0
        %v556 = vrcp.pop %v555
        %v557 = vmul.f32 1.0, %v556
        %v559 = vsel %vm305, %v557, 0
        %561 = vmatprep.subr.mxu0 0.0
        %562 = vmatpush1.msra.mxu0 %v559
        %563 = vmatprep.subr.mxu0 0.0
        %564 = vmatpush1.msra.mxu0 0.0
        %565 = vmatprep.subr.mxu0 0.0
        %566 = vmatpush1.msra.mxu0 0.0
        %567 = vmatprep.subr.mxu0 0.0
        %568 = vmatpush1.msra.mxu0 0.0
        %569 = vmatprep.subr.mxu0 0.0
        %570 = vmatpush1.msra.mxu0 0.0
        %571 = vmatprep.subr.mxu0 0.0
        %572 = vmatpush1.msra.mxu0 0.0
        %573 = vmatprep.subr.mxu0 0.0
        %574 = vmatpush1.msra.mxu0 0.0
        %575 = vmatprep.subr.mxu0 0.0
        %576 = vmatpush1.msra.mxu0 0.0
        %577 = vmatprep.subr.mxu0 0.0
        %578 = vmatpush1.msra.mxu0 0.0
        %579 = vmatprep.subr.mxu0 0.0
        %580 = vmatpush1.msra.mxu0 0.0
        %581 = vmatprep.subr.mxu0 0.0
        %582 = vmatpush1.msra.mxu0 0.0
        %583 = vmatprep.subr.mxu0 0.0
        %584 = vmatpush1.msra.mxu0 0.0
        %585 = vmatprep.subr.mxu0 0.0
        %586 = vmatpush1.msra.mxu0 0.0
        %587 = vmatprep.subr.mxu0 0.0
        %588 = vmatpush1.msra.mxu0 0.0
        %589 = vmatprep.subr.mxu0 0.0
        %590 = vmatpush1.msra.mxu0 0.0
        %591 = vmatprep.subr.mxu0 0.0
        %592 = vmatpush1.msra.mxu0 0.0
        %593 = vmatprep.subr.mxu0 0.0
        %594 = vmatpush1.msra.mxu0 0.0
        %595 = vmatprep.subr.mxu0 0.0
        %596 = vmatpush1.msra.mxu0 0.0
        %597 = vmatprep.subr.mxu0 0.0
        %598 = vmatpush1.msra.mxu0 0.0
        %599 = vmatprep.subr.mxu0 0.0
        %600 = vmatpush1.msra.mxu0 0.0
        %601 = vmatprep.subr.mxu0 0.0
        %602 = vmatpush1.msra.mxu0 0.0
        %603 = vmatprep.subr.mxu0 0.0
        %604 = vmatpush1.msra.mxu0 0.0
        %605 = vmatprep.subr.mxu0 0.0
        %606 = vmatpush1.msra.mxu0 0.0
        %607 = vmatprep.subr.mxu0 0.0
        %608 = vmatpush1.msra.mxu0 0.0
        %609 = vmatprep.subr.mxu0 0.0
        %610 = vmatpush1.msra.mxu0 0.0
        %611 = vmatprep.subr.mxu0 0.0
        %612 = vmatpush1.msra.mxu0 0.0
        %613 = vmatprep.subr.mxu0 0.0
        %614 = vmatpush1.msra.mxu0 0.0
        %615 = vmatprep.subr.mxu0 0.0
        %616 = vmatpush1.msra.mxu0 0.0
        %617 = vmatprep.subr.mxu0 0.0
        %618 = vmatpush1.msra.mxu0 0.0
        %619 = vmatprep.subr.mxu0 0.0
        %620 = vmatpush1.msra.mxu0 0.0
        %621 = vmatprep.subr.mxu0 0.0
        %622 = vmatpush1.msra.mxu0 0.0
        %623 = vmatprep.subr.mxu0 0.0
        %624 = vmatpush1.msra.mxu0 0.0
        %625 = vmatprep.mubr.f32.mxu0 0.0
        %626 = vmatmul.mubr.f32.gmra.mrb[0].mxu0 %v303
        %v627 = vpop.f32.mrb[0].mxu0
        %v628 = vadd.f32 %v297, %v627
        %v629 = vpop.f32.mrb[0].mxu0
        %630 = vdwg.mxu0
        %632 = vset.pattern.permute.xlu0 0
        %633 = vperm.xlu0 %632, %v628
        %v634 = vpop.permute.xlu0 %633
        %v636 = vmul.f32 %v469, %v634
        %v637 = vmul.f32 %v471, %v634
        %v638 = vadd.f32 %v636, %v377
        %v639 = vadd.f32 %v637, %v379
        %v642 = vcombine.low %v638, %v639
        %644 = vst [vmem:[%s282] sm:$0xff] %v642
        %v645 = vadd.f32 %v636, %v454
        %v646 = vadd.f32 %v637, %v456
        %v649 = vcombine.low %v645, %v646
        %651 = vst [vmem:[%s289] sm:$0xff] %v649
        %s652 = sand.u32 %s131, 1
        %s653 = scalar_lea.sflag [#allocation4], %s652
        %s654 = sand.u32 %s131, 1
        %s655 = smul.addr %s654, 8
        %s656 = scalar_lea.vmem [#allocation7], %s655
        %s657 = sand.u32 %s157, 1
        %s658 = scalar_lea.sflag [#allocation9], %s657
        %s659 = sand.u32 %s157, 1
        %s660 = smul.addr %s659, 8
        %s661 = scalar_lea.vmem [#allocation8], %s660
        // Predicated region
        $region45: #{tpu_custom_call.1} parent=35 // pred_check
          %p662 = pneg %p141
        $region46: #{tpu_custom_call.1} parent=35 // pred_check_branch
          %664 = sbr.rel (%p662) target = $region48
        $region47: #{tpu_custom_call.1} parent=35 // pred_region
          %s666 = ssub.s32 128, 128
          %667 = vsyncadd %s653, %s666
          %s668 = smul.addr %s29, 2
          %s669 = smul.addr %s668, 64
          %s670 = scalar_lea.hbm %s4, %s669
          %s672 = sshll.u32 %s656, 4
          %s673 = int_to_ptr.vmem [resolvable:$true] %s672
          %675 = dma.vmem_to_hbm [thread:$0]  %s673, 128, %s670, %s653
        $region48: #{tpu_custom_call.1} parent=35 // pred_fallthru
          _
        // Predicated region
        $region49: #{tpu_custom_call.1} parent=35 // pred_check
          %p676 = pneg %p167
        $region50: #{tpu_custom_call.1} parent=35 // pred_check_branch
          %678 = sbr.rel (%p676) target = $region52
        $region51: #{tpu_custom_call.1} parent=35 // pred_region
          %s680 = ssub.s32 128, 128
          %681 = vsyncadd %s658, %s680
          %s682 = smul.addr %s29, 2
          %s683 = smul.addr %s682, 64
          %s684 = scalar_lea.hbm %s5, %s683
          %s686 = sshll.u32 %s661, 4
          %s687 = int_to_ptr.vmem [resolvable:$true] %s686
          %689 = dma.vmem_to_hbm [thread:$0]  %s687, 128, %s684, %s658
        $region52: #{tpu_custom_call.1} parent=35 // pred_fallthru
          _
      $region36: #{tpu_custom_call.1} parent=5 // pred_fallthru
        _
      %p690 = scmp.le.s32.totalorder 2, %s24
      // Predicated region
      $region53: #{tpu_custom_call.1} parent=5 // pred_check
        %p691 = pneg %p690
      $region54: #{tpu_custom_call.1} parent=5 // pred_check_branch
        %693 = sbr.rel (%p691) target = $region56
      $region55: #{tpu_custom_call.1} parent=5 // pred_region
        %s694 = ssub.s32 %s24, 2
        // Predicated region
        $region57: #{tpu_custom_call.1} parent=55 // pred_check
          %p695 = pneg %p147
        $region58: #{tpu_custom_call.1} parent=55 // pred_check_branch
          %697 = sbr.rel (%p695) target = $region60
        $region59: #{tpu_custom_call.1} parent=55 // pred_region
          %s698 = sand.u32 %s132, 1
          %s699 = scalar_lea.sflag [#allocation4], %s698
          %s700 = sand.u32 %s132, 1
          %s701 = smul.addr %s700, 8
          %s702 = scalar_lea.vmem [#allocation7], %s701
          %703 = dma.done %s699, 128
        $region60: #{tpu_custom_call.1} parent=55 // pred_fallthru
          _
        // Predicated region
        $region61: #{tpu_custom_call.1} parent=55 // pred_check
          %p704 = pneg %p173
        $region62: #{tpu_custom_call.1} parent=55 // pred_check_branch
          %706 = sbr.rel (%p704) target = $region64
        $region63: #{tpu_custom_call.1} parent=55 // pred_region
          %s707 = sand.u32 %s158, 1
          %s708 = scalar_lea.sflag [#allocation9], %s707
          %s709 = sand.u32 %s158, 1
          %s710 = smul.addr %s709, 8
          %s711 = scalar_lea.vmem [#allocation8], %s710
          %712 = dma.done %s708, 128
        $region64: #{tpu_custom_call.1} parent=55 // pred_fallthru
          _
      $region56: #{tpu_custom_call.1} parent=5 // pred_fallthru
        _
    $region6: #{tpu_custom_call.1} parent=1 // loop_footer
      %s28 = sadd.s32 1, %s24
    $region7: #{tpu_custom_call.1} parent=1 // loop_footer_branch
      %23 = sbr.rel target = $region3
    $region8: #{tpu_custom_call.1} parent=1 // loop_exit
      _
    %713 = vsyncpa [#allocation3], 1
    %s714 = scalar_lea.sflag [#allocation3], 1
    %715 = vsyncpa %s714, 1
    %716 = vsyncpa [#allocation6], 1
    %s717 = scalar_lea.sflag [#allocation6], 1
    %718 = vsyncpa %s717, 1
    %719 = vsyncpa [#allocation4], 1
    %s720 = scalar_lea.sflag [#allocation4], 1
    %721 = vsyncpa %s720, 1
    %722 = vsyncpa [#allocation9], 1
    %s723 = scalar_lea.sflag [#allocation9], 1
    %724 = vsyncpa %s723, 1

</llo_original>
